<compile_context>
chip_gen: v5e
topology: v5e:2x2
jax: 0.10.0
libtpu: 0.0.40
codegen_flags: <defaults>
</compile_context>

<pallas_src>
import functools

import jax
import jax.numpy as jnp
from jax.experimental import pallas as pl
from jax.experimental.pallas import tpu as pltpu


_TQ_MAX = 256                      # dst tile (kept at 256: >=2 "parallel" tiles for v7x)
_TK_MAX = 512                      # src tile (amortizes per-grid-step overhead)
_NEG_INF = -1e30                   # finite additive mask value: exp() flushes to 0
_VMEM_LIMIT = 48 * 1024 * 1024     # scoped VMEM budget (<= 64 MiB physical on v7x)
_SRC_RESIDENT_BYTES = 16 * 1024 * 1024   # keep h_src fully VMEM-resident up to this


def _round_up(x, m):
    return ((x + m - 1) // m) * m


def _tile_plan(n):
    """Padded node count and (dst, src) attention tile sizes."""
    if n <= _TQ_MAX:
        n_pad = _round_up(n, 32)           # covers int8 / bf16 sublane packing
        return n_pad, n_pad, n_pad
    n_pad = _round_up(n, _TK_MAX)          # _TK_MAX is a multiple of _TQ_MAX
    return n_pad, _TQ_MAX, _TK_MAX


# ---------------------------------------------------------------------------
# Kernel 1: fused projection  x @ [W | W@Adst | W@Asrc | 0]  (single MXU matmul)
# ---------------------------------------------------------------------------
def _gat_proj_kernel(x_ref, w_ref, o_ref):
    o_ref[...] = jnp.dot(x_ref[...], w_ref[...],
                         preferred_element_type=jnp.float32).astype(o_ref.dtype)


# ---------------------------------------------------------------------------
# Kernel 2: flash-style masked attention softmax + neighbor aggregation.
# ---------------------------------------------------------------------------
def _gat_attn_kernel(blk_ref, adst_ref, asrcT_ref, hsrc_ref, mask_ref, b_ref,
                     o_ref, m_sc, l_sc, acc_sc, *,
                     heads, head_dim, out_dim, out_pad, tk, n_k,
                     concat, src_resident, apply_elu, apply_logsoftmax):
    qi = pl.program_id(0)
    ki = pl.program_id(1)

    @pl.when(ki == 0)
    def _():
        m_sc[...] = jnp.full_like(m_sc, -jnp.inf)
        l_sc[...] = jnp.zeros_like(l_sc)
        acc_sc[...] = jnp.zeros_like(acc_sc)

    # Skip blocks with zero edges entirely (scalar-prefetched nonempty map).
    @pl.when(blk_ref[qi * n_k + ki] > 0)
    def _():
        a_d = adst_ref[...]                               # [Tq, H]   f32
        a_sT = asrcT_ref[...]                             # [H, Tk]   f32
        valid = mask_ref[...] != 0                        # [Tq, Tk]  bool (int8 mask)
        if src_resident:
            start = pl.multiple_of(ki * tk, tk)
            hs = hsrc_ref[pl.ds(start, tk), :]            # [Tk, HC_pad] bf16
        else:
            hs = hsrc_ref[...]                            # [Tk, HC_pad] bf16

        # One fused pass per head: only ONE [Tq, Tk] score tile live at a time.
        for h in range(heads):
            e = a_d[:, h:h + 1] + a_sT[h:h + 1, :]        # [Tq, Tk]
            e = jnp.maximum(e, 0.2 * e)                   # leaky_relu(0.2)
            e = jnp.where(valid, e, _NEG_INF)             # finite mask, one select
            m_prev = m_sc[:, h:h + 1]                     # [Tq, 1]
            m_new = jnp.maximum(m_prev, jnp.max(e, axis=1, keepdims=True))
            coef = jnp.exp(m_prev - m_new)                # [Tq, 1]
            p = jnp.exp(e - m_new)                        # [Tq, Tk]  (f32; bf16 exp on
                                                          #  v6e/v7x is a possible sweep)
            l_sc[:, h:h + 1] = (coef * l_sc[:, h:h + 1]
                                + jnp.sum(p, axis=1, keepdims=True))
            hh = hs[:, h * head_dim:(h + 1) * head_dim]   # [Tk, C]  bf16
            delta = jnp.dot(p.astype(jnp.bfloat16), hh,
                            preferred_element_type=jnp.float32)   # [Tq, C]
            sl = slice(h * head_dim, (h + 1) * head_dim)
            acc_sc[:, sl] = coef * acc_sc[:, sl] + delta  # plain column broadcast
            m_sc[:, h:h + 1] = m_new

    @pl.when(ki == pl.num_programs(1) - 1)
    def _():
        # Deferred normalization; max() guard keeps fully-skipped rows finite (0).
        inv_l = pl.reciprocal(jnp.maximum(l_sc[...], 1e-20), approx=True)  # [Tq, H]
        acc = acc_sc[...]                                                  # [Tq, HC]
        outs = [acc[:, h * head_dim:(h + 1) * head_dim] * inv_l[:, h:h + 1]
                for h in range(heads)]
        if concat:
            out = jnp.concatenate(outs, axis=1) if heads > 1 else outs[0]
        else:                                             # head mean (concat=False)
            out = outs[0]
            for h in range(1, heads):
                out = out + outs[h]
            out = out * (1.0 / heads)
        out = out + b_ref[...]                            # [Tq, out_dim]
        if apply_elu:
            out = jnp.where(out > 0, out, jnp.expm1(jnp.minimum(out, 0.0)))
        if apply_logsoftmax:
            mx = jnp.max(out, axis=1, keepdims=True)
            out = out - (mx + jnp.log(jnp.sum(jnp.exp(out - mx),
                                              axis=1, keepdims=True)))
        if out_pad > out_dim:                             # lane-dense store
            out = jnp.concatenate(
                [out, jnp.zeros((out.shape[0], out_pad - out_dim), out.dtype)],
                axis=1)
        o_ref[...] = out.astype(o_ref.dtype)


# ---------------------------------------------------------------------------
# One-time preparation (mask, block map, folded/padded weights).
# ---------------------------------------------------------------------------
def prepare_attention_mask(adj):
    """int8 {0,1} dense mask (padded) + per-(dst,src)-block nonempty map."""
    n = adj.shape[0]
    n_pad, tq, tk = _tile_plan(n)
    mask = jnp.pad((adj > 0).astype(jnp.int8), ((0, n_pad - n), (0, n_pad - n)))
    n_q, n_k = n_pad // tq, n_pad // tk
    blk = mask.astype(jnp.int32).reshape(n_q, tq, n_k, tk).sum(axis=(1, 3))
    blkmap = (blk > 0).astype(jnp.int32).reshape(-1)      # [n_q * n_k] int32
    return mask, blkmap, n_pad, tq, tk


def prepare_layer_params(p, fin_pad_in):
    """Fold attention vectors into W's padded lanes; pad to kernel shapes."""
    w = p["w"]                                            # [fin, heads*C]
    heads = p["heads"]
    fin, hc = w.shape
    c = hc // heads
    w_r = w.reshape(fin, heads, c)
    w_adst = jnp.einsum("fhc,hc->fh", w_r, p["att_dst"])  # [fin, heads]
    w_asrc = jnp.einsum("fhc,hc->fh", w_r, p["att_src"])  # [fin, heads]
    hc_pad = _round_up(hc + 2 * heads, 128)
    w_aug = jnp.concatenate(
        [w, w_adst, w_asrc,
         jnp.zeros((fin, hc_pad - hc - 2 * heads), w.dtype)], axis=1)
    w_aug = jnp.pad(w_aug, ((0, fin_pad_in - fin), (0, 0))).astype(jnp.bfloat16)
    out_dim = hc if p["concat"] else c
    return dict(w_aug=w_aug, bias=p["bias"].astype(jnp.float32),
                heads=heads, head_dim=c, hc=hc, hc_pad=hc_pad,
                concat=p["concat"], out_dim=out_dim,
                out_pad=_round_up(out_dim, 128))


# ---------------------------------------------------------------------------
# Layer / network wrappers.
# ---------------------------------------------------------------------------
def gat_layer(x_pad, lp, mask_pad, blkmap, *, n_pad, tq, tk,
              apply_elu, apply_logsoftmax, out_dtype,
              src_resident_bytes=_SRC_RESIDENT_BYTES):
    heads, c = lp["heads"], lp["head_dim"]
    hc, hc_pad = lp["hc"], lp["hc_pad"]
    out_dim, out_pad = lp["out_dim"], lp["out_pad"]
    fin_pad = x_pad.shape[1]
    n_q, n_k = n_pad // tq, n_pad // tk

    # ---- Kernel 1: fused projection ----------------------------------------
    proj = pl.pallas_call(
        _gat_proj_kernel,
        out_shape=jax.ShapeDtypeStruct((n_pad, hc_pad), jnp.bfloat16),
        grid=(n_q,),
        in_specs=[pl.BlockSpec((tq, fin_pad), lambda i: (i, 0)),
                  pl.BlockSpec((fin_pad, hc_pad), lambda i: (0, 0))],
        out_specs=pl.BlockSpec((tq, hc_pad), lambda i: (i, 0)),
        compiler_params=pltpu.CompilerParams(
            dimension_semantics=("parallel",),
            vmem_limit_bytes=_VMEM_LIMIT),
    )(x_pad, lp["w_aug"])

    # Tiny XLA ops: pull the folded attention coefficients out of proj.
    a_dst = proj[:, hc:hc + heads].astype(jnp.float32)                   # [N, H]
    a_srcT = proj[:, hc + heads:hc + 2 * heads].astype(jnp.float32).T    # [H, N]

    src_resident = (n_pad * hc_pad * 2) <= src_resident_bytes
    if src_resident:      # whole h_proj stays in VMEM across the src axis
        hsrc_spec = pl.BlockSpec((n_pad, hc_pad), lambda qi, ki, blk: (0, 0))
    else:                 # streamed per src tile
        hsrc_spec = pl.BlockSpec((tk, hc_pad), lambda qi, ki, blk: (ki, 0))

    kernel = functools.partial(
        _gat_attn_kernel,
        heads=heads, head_dim=c, out_dim=out_dim, out_pad=out_pad,
        tk=tk, n_k=n_k, concat=lp["concat"], src_resident=src_resident,
        apply_elu=apply_elu, apply_logsoftmax=apply_logsoftmax)

    out = pl.pallas_call(
        kernel,
        out_shape=jax.ShapeDtypeStruct((n_pad, out_pad), out_dtype),
        grid_spec=pltpu.PrefetchScalarGridSpec(
            num_scalar_prefetch=1,
            grid=(n_q, n_k),
            in_specs=[
                pl.BlockSpec((tq, heads), lambda qi, ki, blk: (qi, 0)),
                pl.BlockSpec((heads, tk), lambda qi, ki, blk: (0, ki)),
                hsrc_spec,
                pl.BlockSpec((tq, tk), lambda qi, ki, blk: (qi, ki)),
                pl.BlockSpec((1, out_dim), lambda qi, ki, blk: (0, 0)),
            ],
            out_specs=pl.BlockSpec((tq, out_pad), lambda qi, ki, blk: (qi, 0)),
            scratch_shapes=[
                pltpu.VMEM((tq, heads), jnp.float32),   # running max
                pltpu.VMEM((tq, heads), jnp.float32),   # running denominator
                pltpu.VMEM((tq, hc), jnp.float32),      # running weighted sum
            ]),
        compiler_params=pltpu.CompilerParams(
            dimension_semantics=("parallel", "arbitrary"),
            vmem_limit_bytes=_VMEM_LIMIT),
    )(blkmap, a_dst, a_srcT, proj, mask_pad, lp["bias"])
    return out


def gat_net_forward(x, adj, params, *, src_resident_bytes=_SRC_RESIDENT_BYTES):
    """Eval-mode forward (F.dropout with training=False is identity)."""
    n, f = x.shape
    mask_pad, blkmap, n_pad, tq, tk = prepare_attention_mask(adj)

    # One-time prep (outside the layer kernels): pad activations once to bf16,
    # fold/pad weights; padded [n_pad, *_pad] layout is kept between layers.
    fin_pad = _round_up(f, 128)
    x_pad = jnp.pad(x, ((0, n_pad - n), (0, fin_pad - f))).astype(jnp.bfloat16)
    lps, cur = [], fin_pad
    for p in params:
        lp = prepare_layer_params(p, cur)
        lps.append(lp)
        cur = lp["out_pad"]

    h = x_pad
    for li, lp in enumerate(lps):
        last = li == len(lps) - 1
        h = gat_layer(h, lp, mask_pad, blkmap, n_pad=n_pad, tq=tq, tk=tk,
                      apply_elu=not last, apply_logsoftmax=last,
                      out_dtype=jnp.float32 if last else jnp.bfloat16,
                      src_resident_bytes=src_resident_bytes)
    return h[:n, :lps[-1]["out_dim"]]


# ---------------------------------------------------------------------------
# Parameter init (mirrors GAT_Net.__init__ / PyG GATConv shapes).
# ---------------------------------------------------------------------------
def glorot(key, shape):
    fan_in, fan_out = shape[-2], shape[-1]
    limit = jnp.sqrt(6.0 / (fan_in + fan_out))
    return jax.random.uniform(key, shape, jnp.float32, -limit, limit)


def init_gat_params(key, num_features, hidden, num_classes, num_layers,
                    heads_gat, output_heads_gat):
    params = []
    dims = [(num_features, hidden, heads_gat, True)]
    for _ in range(num_layers - 2):
        dims.append((hidden * heads_gat, hidden, heads_gat, True))
    dims.append((hidden * heads_gat, num_classes, output_heads_gat, False))

    for (fin, fout, heads, concat) in dims:
        key, k1, k2, k3 = jax.random.split(key, 4)
        out_dim = heads * fout if concat else fout
        params.append(dict(
            w=glorot(k1, (fin, heads * fout)),
            att_src=glorot(k2, (heads, fout)),
            att_dst=glorot(k3, (heads, fout)),
            bias=jnp.zeros((1, out_dim), jnp.float32),
            heads=heads, concat=concat))
    return params


# ---------------------------------------------------------------------------
# Pure-JAX f32 reference (dense GATConv semantics) for validation.
# ---------------------------------------------------------------------------
def _reference_layer(h, adj, p, is_last):
    heads, concat = p["heads"], p["concat"]
    hc = p["w"].shape[1]
    c = hc // heads
    hp = h @ p["w"]
    outs = []
    for hd in range(heads):
        hh = hp[:, hd * c:(hd + 1) * c]
        a_s = hh @ p["att_src"][hd]
        a_d = hh @ p["att_dst"][hd]
        e = a_d[:, None] + a_s[None, :]
        e = jnp.where(e > 0, e, 0.2 * e)
        e = jnp.where(adj > 0, e, -jnp.inf)
        alpha = jax.nn.softmax(e, axis=1)
        outs.append(alpha @ hh)
    out = (jnp.concatenate(outs, axis=1) if concat else sum(outs) / heads)
    out = out + p["bias"]
    return jax.nn.log_softmax(out, axis=1) if is_last else jax.nn.elu(out)


def gat_net_reference(x, adj, params):
    h = x
    for li, p in enumerate(params):
        h = _reference_layer(h, adj, p, is_last=(li == len(params) - 1))
    return h


# ---------------------------------------------------------------------------
# Demo / self-test.
# ---------------------------------------------------------------------------
def _make_graph(key, n, num_extra_edges):
    """Dense adjacency adj[i, j] = 1 iff edge j -> i; ring + random + self-loops."""
    k1, k2 = jax.random.split(key)
    src = jnp.arange(n, dtype=jnp.int32)
    dst = (src + 1) % n
    rand_src = jax.random.randint(k1, (num_extra_edges,), 0, n, dtype=jnp.int32)
    rand_dst = jax.random.randint(k2, (num_extra_edges,), 0, n, dtype=jnp.int32)
    adj = jnp.zeros((n, n), jnp.float32)
    adj = adj.at[jnp.concatenate([dst, rand_dst]),
                 jnp.concatenate([src, rand_src])].set(1.0)
    adj = adj.at[jnp.arange(n), jnp.arange(n)].set(1.0)   # add_self_loops=True
    return adj


def _make_path_graph(n):
    """Sparse path graph (i -> i+1) + self-loops: leaves many edge-free blocks."""
    adj = jnp.zeros((n, n), jnp.float32)
    adj = adj.at[jnp.arange(1, n), jnp.arange(0, n - 1)].set(1.0)
    adj = adj.at[jnp.arange(n), jnp.arange(n)].set(1.0)
    return adj


def _run_case(key, adj, num_features, hidden, num_classes, heads_gat,
              output_heads_gat, num_layers, check_tiled_path=False):
    n = adj.shape[0]
    k_x, k_p = jax.random.split(key)
    x = jax.random.normal(k_x, (n, num_features), jnp.float32)
    params = init_gat_params(k_p, num_features, hidden, num_classes,
                             num_layers, heads_gat, output_heads_gat)

    # Full forward through the Pallas kernels.
    out = jax.block_until_ready(gat_net_forward(x, adj, params))
    assert out.shape == (n, num_classes), out.shape
    assert bool(jnp.all(jnp.isfinite(out)))
    assert bool(jnp.allclose(jnp.sum(jnp.exp(out), axis=1), 1.0, atol=1e-3))

    # Single-layer check vs f32 reference (kernels use bf16 MXU + bf16 storage).
    mask_pad, blkmap, n_pad, tq, tk = prepare_attention_mask(adj)
    fin_pad = _round_up(num_features, 128)
    x_pad = jnp.pad(x, ((0, n_pad - n), (0, fin_pad - num_features))
                    ).astype(jnp.bfloat16)
    lp0 = prepare_layer_params(params[0], fin_pad)
    l1 = gat_layer(x_pad, lp0, mask_pad, blkmap, n_pad=n_pad, tq=tq, tk=tk,
                   apply_elu=True, apply_logsoftmax=False,
                   out_dtype=jnp.float32)[:n, :lp0["out_dim"]]
    l1_ref = _reference_layer(x, adj, params[0], is_last=False)
    err1 = float(jnp.max(jnp.abs(l1 - l1_ref)))
    assert err1 < 0.3, f"layer-1 max |out - ref| = {err1}"

    # Full-stack sanity check (loose: bf16 error compounds over layers).
    ref = gat_net_reference(x, adj, params)
    err = float(jnp.max(jnp.abs(out - ref)))
    assert err < 1.0, f"full-net max |out - ref| = {err}"

    if check_tiled_path:
        # Force the streamed (non-resident) h_src path and compare.
        out_t = jax.block_until_ready(
            gat_net_forward(x, adj, params, src_resident_bytes=0))
        assert bool(jnp.all(jnp.isfinite(out_t)))
        err_t = float(jnp.max(jnp.abs(out_t - out)))
        assert err_t < 5e-2, f"resident vs streamed h_src mismatch = {err_t}"


if __name__ == "__main__":
    key = jax.random.PRNGKey(0)
    k1, k2, k3 = jax.random.split(key, 3)

    # Small case (matches the module's toy config): single-tile (1, 1) grid.
    _run_case(k1, _make_graph(k1, 16, 32),
              num_features=16, hidden=8, num_classes=4,
              heads_gat=2, output_heads_gat=1, num_layers=3)

    # Medium case: node padding (384 -> 512), 2 "parallel" dst tiles, and both
    # the VMEM-resident and the streamed h_src code paths.
    _run_case(k2, _make_graph(k2, 384, 768),
              num_features=32, hidden=16, num_classes=5,
              heads_gat=2, output_heads_gat=1, num_layers=3,
              check_tiled_path=True)

    # Sparse path graph (700 -> 1024 pad): multiple src tiles (online-softmax
    # rescale across ki), empty-block skipping, and a fully-padded dst tile
    # (exercises the l=0 guard in the finalize).
    _run_case(k3, _make_path_graph(700),
              num_features=32, hidden=16, num_classes=6,
              heads_gat=2, output_heads_gat=1, num_layers=3)

    print("KERNEL_OK")
</pallas_src>

<mosaic_0001>
module attributes {stable_mosaic.version = 11 : i64} {
  func.func @_gat_proj_kernel(%arg0: i32, %arg1: memref<32x128xbf16, #tpu.memory_space<vmem>>, %arg2: memref<128x128xbf16, #tpu.memory_space<vmem>>, %arg3: memref<32x128xbf16, #tpu.memory_space<vmem>>) attributes {dimension_semantics = [#tpu.dimension_semantics<parallel>], iteration_bounds = array<i64: 1>, scalar_prefetch = 0 : i64, scratch_operands = 0 : i64, tpu.core_type = #tpu.core_type<tc>, window_params = [{transform_indices = @transform_0, window_bounds = array<i64: 32, 128>}, {pipeline_mode = #tpu.pipeline_mode<synchronous>, transform_indices = @transform_1, window_bounds = array<i64: 128, 128>}, {transform_indices = @transform_2, window_bounds = array<i64: 32, 128>}]} {
    %c0 = arith.constant 0 : index
    %c0_0 = arith.constant 0 : index
    %0 = vector.load %arg1[%c0, %c0_0] : memref<32x128xbf16, #tpu.memory_space<vmem>>, vector<32x128xbf16>
    %c0_1 = arith.constant 0 : index
    %c0_2 = arith.constant 0 : index
    %1 = vector.load %arg2[%c0_1, %c0_2] : memref<128x128xbf16, #tpu.memory_space<vmem>>, vector<128x128xbf16>
    %cst = arith.constant dense<0.000000e+00> : vector<32x128xf32>
    %2 = tpu.matmul %0, %1, %cst {dimension_numbers = #tpu.dot_dimension_numbers<[1], [0], [0], [1], [0, 0, 1, 1], [], []>} : vector<32x128xbf16>, vector<128x128xbf16>, vector<32x128xf32> -> vector<32x128xf32>
    %3 = arith.truncf %2 : vector<32x128xf32> to vector<32x128xbf16>
    %c0_3 = arith.constant 0 : index
    %c0_4 = arith.constant 0 : index
    %4 = vector.load %arg3[%c0_3, %c0_4] : memref<32x128xbf16, #tpu.memory_space<vmem>>, vector<32x128xbf16>
    tpu.vector_store %arg3[%c0_3, %c0_4], %3 {strides = array<i32>} : memref<32x128xbf16, #tpu.memory_space<vmem>>, vector<32x128xbf16>,
    return
  }
  func.func @transform_0(%arg0: i32) -> (i32, i32) {
    %c0_i32 = arith.constant 0 : i32
    %c0_i32_0 = arith.constant 0 : i32
    return %arg0, %c0_i32 : i32, i32
  }
  func.func @transform_1(%arg0: i32) -> (i32, i32) {
    %c0_i32 = arith.constant 0 : i32
    %c0_i32_0 = arith.constant 0 : i32
    %c0_i32_1 = arith.constant 0 : i32
    return %c0_i32, %c0_i32_0 : i32, i32
  }
  func.func @transform_2(%arg0: i32) -> (i32, i32) {
    %c0_i32 = arith.constant 0 : i32
    %c0_i32_0 = arith.constant 0 : i32
    return %arg0, %c0_i32 : i32, i32
  }
}

</mosaic_0001>

<llo_original>
// kernel: tpu_custom_call.1
$region0: #{tpu_custom_call.1}
  #allocation0 [shape = 'u32[]', space=smem, size = 0x4, offset = 0x4, fixed_abs, tag = 'smem constant byte address 0x4 - core index']
  #allocation1 [shape = 'u32[72,128]{1,0:T(1,128)}', space=vmem, size = 0x9000, scoped, tag = 'internal scratch']
  %s0 = inlined_call_operand.hbm [shape: bf16[32,128], index: 0, kind: input, shape index: {}]
  %s1 = inlined_call_operand.hbm [shape: bf16[128,128], index: 1, kind: input, shape index: {}]
  %s2 = inlined_call_operand.hbm [shape: bf16[32,128], index: 2, kind: output, shape index: {}]
  %s3 = sld [smem:[#allocation0]]
  $region26: #{tpu_custom_call.1} parent=0
    _
  %s5 = ssub.s32 1, %s3
  %s6 = scalar_select 0, %s5, %s3
  $region1: #{tpu_custom_call.1} parent=0
    #allocation2 [shape = 'u8[8192]{0}', space=vmem, size = 0x2000, scoped, tag = 'input window, operand 0, single buffered']
    #allocation3 [shape = 's32[1]{0}', space=sflag, size = 0x4, scoped, tag = 'scoped memory for tpu_custom_call.1']
    #allocation4 [shape = 's32[1]{0}', space=sflag, size = 0x4, scoped, tag = 'scoped memory for tpu_custom_call.1']
    #allocation5 [shape = 'u8[32768]{0}', space=vmem, size = 0x8000, scoped, tag = 'input window, operand 1, single buffered']
    #allocation6 [shape = 's32[1]{0}', space=sflag, size = 0x4, scoped, tag = 'scoped memory for tpu_custom_call.1']
    #allocation7 [shape = 'u8[8192]{0}', space=vmem, size = 0x2000, scoped, tag = 'output window, operand 0, single buffered']
    %7 = vsyncpa [#allocation3], 0
    %8 = vsyncpa [#allocation6], 0
    %9 = vsyncpa [#allocation4], 0
    // Predicated region
    $region2: #{tpu_custom_call.1} parent=1 // pred_check
      _
    $region3: #{tpu_custom_call.1} parent=1 // pred_check_branch
      %11 = sbr.rel (0) target = $region5
    $region4: #{tpu_custom_call.1} parent=1 // pred_region
      %13 = vsyncadd [#allocation3], 0
      %s14 = sshll.u32 %s0, 4
      %s15 = int_to_ptr.hbm [resolvable:$true] %s14
      %s16 = sshll.u32 [#allocation2], 4
      %s17 = int_to_ptr.vmem [resolvable:$true] %s16
      %22 = dma.hbm_to_vmem [thread:$0]  %s15, 256, %s17, [#allocation3], 64, 64, 4
    $region5: #{tpu_custom_call.1} parent=1 // pred_fallthru
      _
    // Predicated region
    $region6: #{tpu_custom_call.1} parent=1 // pred_check
      _
    $region7: #{tpu_custom_call.1} parent=1 // pred_check_branch
      %24 = sbr.rel (0) target = $region9
    $region8: #{tpu_custom_call.1} parent=1 // pred_region
      %26 = vsyncadd [#allocation6], 0
      %s27 = sshll.u32 %s1, 4
      %s28 = int_to_ptr.hbm [resolvable:$true] %s27
      %s29 = sshll.u32 [#allocation5], 4
      %s30 = int_to_ptr.vmem [resolvable:$true] %s29
      %35 = dma.hbm_to_vmem [thread:$0]  %s28, 1024, %s30, [#allocation6], 64, 64, 4
    $region9: #{tpu_custom_call.1} parent=1 // pred_fallthru
      _
    // Predicated region
    $region10: #{tpu_custom_call.1} parent=1 // pred_check
      _
    $region11: #{tpu_custom_call.1} parent=1 // pred_check_branch
      %37 = sbr.rel (0) target = $region13
    $region12: #{tpu_custom_call.1} parent=1 // pred_region
      %39 = dma.done [#allocation3], 256
    $region13: #{tpu_custom_call.1} parent=1 // pred_fallthru
      _
    // Predicated region
    $region14: #{tpu_custom_call.1} parent=1 // pred_check
      _
    $region15: #{tpu_custom_call.1} parent=1 // pred_check_branch
      %41 = sbr.rel (0) target = $region17
    $region16: #{tpu_custom_call.1} parent=1 // pred_region
      %43 = dma.done [#allocation6], 1024
    $region17: #{tpu_custom_call.1} parent=1 // pred_fallthru
      _
    %v44 = vld [vmem:[#allocation2] sm:$0xf]
    %v45 = vld [vmem:[#allocation2 + $0x4] sm:$0xf]
    %v46 = vld [vmem:[#allocation2 + $0x8] sm:$0xf]
    %v47 = vld [vmem:[#allocation2 + $0xc] sm:$0xf]
    %v48 = vld [vmem:[#allocation5] sm:$0xf]
    %v49 = vld [vmem:[#allocation5 + $0x4] sm:$0xf]
    %v50 = vld [vmem:[#allocation5 + $0x8] sm:$0xf]
    %v51 = vld [vmem:[#allocation5 + $0xc] sm:$0xf]
    %v52 = vld [vmem:[#allocation5 + $0x10] sm:$0xf]
    %v53 = vld [vmem:[#allocation5 + $0x14] sm:$0xf]
    %v54 = vld [vmem:[#allocation5 + $0x18] sm:$0xf]
    %v55 = vld [vmem:[#allocation5 + $0x1c] sm:$0xf]
    %v56 = vld [vmem:[#allocation5 + $0x20] sm:$0xf]
    %v57 = vld [vmem:[#allocation5 + $0x24] sm:$0xf]
    %v58 = vld [vmem:[#allocation5 + $0x28] sm:$0xf]
    %v59 = vld [vmem:[#allocation5 + $0x2c] sm:$0xf]
    %v60 = vld [vmem:[#allocation5 + $0x30] sm:$0xf]
    %v61 = vld [vmem:[#allocation5 + $0x34] sm:$0xf]
    %v62 = vld [vmem:[#allocation5 + $0x38] sm:$0xf]
    %v63 = vld [vmem:[#allocation5 + $0x3c] sm:$0xf]
    %v68 = vunpack.c.l.b16 %v44
    %v69 = vunpack.c.l.b16 %v45
    %v70 = vunpack.c.l.b16 %v46
    %v71 = vunpack.c.l.b16 %v47
    %v72 = vpack.c.b16 %v69, %v68
    %v73 = vpack.c.b16 %v71, %v70
    %v92 = vunpack.c.l.b16 %v48
    %v93 = vunpack.c.l.b16 %v49
    %v94 = vunpack.c.l.b16 %v50
    %v95 = vunpack.c.l.b16 %v51
    %v96 = vunpack.c.l.b16 %v52
    %v97 = vunpack.c.l.b16 %v53
    %v98 = vunpack.c.l.b16 %v54
    %v99 = vunpack.c.l.b16 %v55
    %v100 = vunpack.c.l.b16 %v56
    %v101 = vunpack.c.l.b16 %v57
    %v102 = vunpack.c.l.b16 %v58
    %v103 = vunpack.c.l.b16 %v59
    %v104 = vunpack.c.l.b16 %v60
    %v105 = vunpack.c.l.b16 %v61
    %v106 = vunpack.c.l.b16 %v62
    %v107 = vunpack.c.l.b16 %v63
    %v108 = vpack.c.b16 %v93, %v92
    %v109 = vpack.c.b16 %v95, %v94
    %v110 = vpack.c.b16 %v97, %v96
    %v111 = vpack.c.b16 %v99, %v98
    %v112 = vpack.c.b16 %v101, %v100
    %v113 = vpack.c.b16 %v103, %v102
    %v114 = vpack.c.b16 %v105, %v104
    %v115 = vpack.c.b16 %v107, %v106
    %124 = vmatpush.bf16.msra.mxu0 %v115
    %125 = vmatpush.bf16.msra.mxu0 %v114
    %126 = vmatpush.bf16.msra.mxu0 %v113
    %127 = vmatpush.bf16.msra.mxu0 %v112
    %128 = vmatpush.bf16.msra.mxu0 %v111
    %129 = vmatpush.bf16.msra.mxu0 %v110
    %130 = vmatpush.bf16.msra.mxu0 %v109
    %131 = vmatpush.bf16.msra.mxu0 %v108
    %132 = vmatmul.bf16.gmra.mxu0 %v72
    %v133 = vpop.f32.mrf.mxu0
    %v134 = vadd.f32 0.0, %v133
    %v135 = vpop.f32.mrf.mxu0
    %v136 = vadd.f32 0.0, %v135
    %137 = vmatmul.bf16.gmra.mxu0 %v73
    %v138 = vpop.f32.mrf.mxu0
    %v139 = vadd.f32 0.0, %v138
    %v140 = vpop.f32.mrf.mxu0
    %v141 = vadd.f32 0.0, %v140
    %142 = vdwg.mxu0
    %v143 = vpack.c.bf16 %v134, %v134
    %v144 = vpack.c.bf16 %v136, %v136
    %v145 = vpack.c.bf16 %v139, %v139
    %v146 = vpack.c.bf16 %v141, %v141
    %147 = vst [vmem:[#allocation7] sm:$0xf] %v143
    %148 = vst [vmem:[#allocation7 + $0x4] sm:$0xf] %v144
    %149 = vst [vmem:[#allocation7 + $0x8] sm:$0xf] %v145
    %150 = vst [vmem:[#allocation7 + $0xc] sm:$0xf] %v146
    // Predicated region
    $region18: #{tpu_custom_call.1} parent=1 // pred_check
      _
    $region19: #{tpu_custom_call.1} parent=1 // pred_check_branch
      %152 = sbr.rel (0) target = $region21
    $region20: #{tpu_custom_call.1} parent=1 // pred_region
      %154 = vsyncadd [#allocation4], 0
      %s155 = sshll.u32 [#allocation7], 4
      %s156 = int_to_ptr.vmem [resolvable:$true] %s155
      %s157 = sshll.u32 %s2, 4
      %s158 = int_to_ptr.hbm [resolvable:$true] %s157
      %163 = dma.vmem_to_hbm [thread:$0]  %s156, 256, %s158, [#allocation4], 64, 64, 4
    $region21: #{tpu_custom_call.1} parent=1 // pred_fallthru
      _
    // Predicated region
    $region22: #{tpu_custom_call.1} parent=1 // pred_check
      _
    $region23: #{tpu_custom_call.1} parent=1 // pred_check_branch
      %165 = sbr.rel (0) target = $region25
    $region24: #{tpu_custom_call.1} parent=1 // pred_region
      %167 = dma.done [#allocation4], 256
    $region25: #{tpu_custom_call.1} parent=1 // pred_fallthru
      _
    %168 = vsyncpa [#allocation3], 1
    %169 = vsyncpa [#allocation6], 1
    %170 = vsyncpa [#allocation4], 1

</llo_original>
